<compile_context>
chip_gen: v5e
topology: v5e:2x2
jax: 0.10.0
libtpu: 0.0.40
codegen_flags: <defaults>
</compile_context>

<pallas_src>
import jax
import jax.numpy as jnp
from jax.experimental import pallas as pl
from jax.experimental.pallas import tpu as pltpu


def _sgru_kernel(x_ref, hx_ref, w_ref, hy_ref):
    B, n_in = x_ref.shape
    H = hx_ref.shape[1]
    cd = w_ref.dtype                      # matmul compute dtype (bf16 by default)

    x = x_ref[...]
    hx = hx_ref[...]
    x_c = x.astype(cd)
    hx_c = hx.astype(cd)

    # Outer-product LHS: [hx*x_0 | ... | hx*x_{I-1} | x | x]  -> (B, I*H + 2I)
    # (static loop over small I; each block is a lane-broadcast multiply).
    parts = [hx_c * x_c[:, i:i + 1] for i in range(n_in)]
    lhs = jnp.concatenate(parts + [x_c, x_c], axis=1)

    # ONE MXU matmul: recurrent term + both switched biases, f32 accumulation.
    # Output columns: [r_pre | z_pre | rec_n + bhn | bin], each H wide.
    out = jnp.dot(lhs, w_ref[...], preferred_element_type=jnp.float32)  # (B, 4H)

    # Gate math stays f32 (v5e has no bf16 VPU/EUP).
    reset_gate = jax.nn.sigmoid(out[:, 0:H])
    update_gate = jax.nn.sigmoid(out[:, H:2 * H])
    new_gate = jnp.tanh(out[:, 3 * H:4 * H] + reset_gate * out[:, 2 * H:3 * H])

    hx_f = hx.astype(jnp.float32)
    # hy = z*hx + (1-z)*n  ==  n + z*(hx - n)
    hy = new_gate + update_gate * (hx_f - new_gate)
    hy_ref[...] = hy.astype(hy_ref.dtype)


def pack_sgru_params(weight_hh, bias_ih, bias_hh, dtype=jnp.bfloat16):
    """One-time layout packing (init time, NOT in the per-step hot path).

    Returns w_fused of shape (I*H + 2*I, 4*H):
      rows [i*H:(i+1)*H]   cols [0:3H] = weight_hh[:, :, i].T   cols [3H:4H] = 0
      rows [I*H   : I*H+I]  : bias_ih columns  -> [br_i | bz_i |   0  | bn_i]
      rows [I*H+I : I*H+2I] : bias_hh columns  -> [br_h | bz_h | bn_h |   0 ]
    No bias folding: the MXU accumulates bias_ih + bias_hh in f32, so packing
    to bf16 is an exact per-parameter quantization.
    """
    three_h, H, n_in = weight_hh.shape
    assert three_h == 3 * H
    assert bias_ih.shape == (3 * H, n_in) and bias_hh.shape == (3 * H, n_in)
    GH = 3 * H

    # w_kron[i*H + h, g] = weight_hh[g, h, i]
    w_kron = jnp.transpose(weight_hh, (2, 1, 0)).reshape(n_in * H, GH)
    w_kron = jnp.concatenate(
        [w_kron, jnp.zeros((n_in * H, H), w_kron.dtype)], axis=1)          # (I*H, 4H)

    zeros_i = jnp.zeros((n_in, H), bias_ih.dtype)
    b_ih_rows = jnp.concatenate(
        [bias_ih[0:H].T, bias_ih[H:2 * H].T, zeros_i, bias_ih[2 * H:3 * H].T],
        axis=1)                                                            # (I, 4H)
    b_hh_rows = jnp.concatenate(
        [bias_hh[0:H].T, bias_hh[H:2 * H].T, bias_hh[2 * H:3 * H].T, zeros_i],
        axis=1)                                                            # (I, 4H)

    w_fused = jnp.concatenate([w_kron, b_ih_rows, b_hh_rows], axis=0)      # (I*H+2I, 4H)
    return w_fused.astype(dtype)


def sgru_cell_forward(x, state, w_fused, *, out_dtype=jnp.float32):
    """Pallas SGRUCell.forward with pre-packed params. Returns hy (1, B, H)."""
    hx = state[0]
    B, n_in = x.shape
    Bh, H = hx.shape
    assert Bh == B
    assert w_fused.shape == (n_in * H + 2 * n_in, 4 * H)

    def _nbytes(shape, dtype):
        n = 1
        for s in shape:
            n *= int(s)
        return n * jnp.dtype(dtype).itemsize

    # Explicit VMEM budget: double-buffered operands + f32 intermediates,
    # capped at v7x's 64 MiB physical VMEM, floored at the common default.
    est = (2 * (_nbytes(x.shape, x.dtype) + _nbytes(hx.shape, hx.dtype)
                + _nbytes(w_fused.shape, w_fused.dtype) + _nbytes((B, H), out_dtype))
           + 16 * _nbytes((B, 4 * H), jnp.float32) + (1 << 20))
    vmem_limit = int(min(64 << 20, max(32 << 20, est)))
    # TODO(synk): if w_fused outgrows this budget (very large H), tile the 4H
    # output axis with a grid + BlockSpec index_map instead of raising the cap.

    vmem = pl.BlockSpec(memory_space=pltpu.MemorySpace.VMEM)
    hy = pl.pallas_call(
        _sgru_kernel,
        out_shape=jax.ShapeDtypeStruct((B, H), out_dtype),
        in_specs=[vmem, vmem, vmem],
        out_specs=vmem,
        compiler_params=pltpu.CompilerParams(vmem_limit_bytes=vmem_limit),
    )(x, hx, w_fused)
    return hy[None, ...]     # match the PyTorch module's hy[None, ...]


def sgru_cell_reference(x, state, weight_hh, bias_ih, bias_hh):
    """Pure-JAX reference, literal transcription of the PyTorch forward."""
    hx = state[0]
    H = hx.shape[1]
    trial_w = jnp.einsum('ghi,bi->bgh', weight_hh, x)
    rec = jnp.einsum('bgh,bh->bg', trial_w, hx)
    tbi = jnp.einsum('gi,bi->bg', bias_ih, x)
    tbh = jnp.einsum('gi,bi->bg', bias_hh, x)
    gates_i = tbi
    gates_h = rec + tbh
    ri, zi, ni = gates_i[:, :H], gates_i[:, H:2 * H], gates_i[:, 2 * H:]
    rh, zh, nh = gates_h[:, :H], gates_h[:, H:2 * H], gates_h[:, 2 * H:]
    r = jax.nn.sigmoid(ri + rh)
    z = jax.nn.sigmoid(zi + zh)
    n = jnp.tanh(ni + r * nh)
    hy = z * hx + (1.0 - z) * n
    return hy[None, ...]


if __name__ == "__main__":
    key = jax.random.PRNGKey(0)
    k_w, k_bi, k_bh, k_h, k_x = jax.random.split(key, 5)
    B, I, H = 2, 4, 32   # batch, input_size (one-hot width), hidden_size

    # Deterministic synthetic parameters (torch.randn analogues), f32 master copy.
    weight_hh = jax.random.normal(k_w, (3 * H, H, I), jnp.float32)
    bias_ih = jax.random.normal(k_bi, (3 * H, I), jnp.float32)
    bias_hh = jax.random.normal(k_bh, (3 * H, I), jnp.float32)

    hx_f32 = jax.random.normal(k_h, (B, H), jnp.float32)
    idx = jax.random.randint(k_x, (B,), 0, I)
    x_f32 = jax.nn.one_hot(idx, I, dtype=jnp.float32)     # one-hot input rows
    # Host-side one-hot check (mirrors the PyTorch assert; stays outside the kernel).
    assert bool(jnp.all(jnp.sum(x_f32, axis=-1) == 1.0))

    # Production config per perf review: bf16 packed weights and bf16 state/input
    # feed the MXU directly; gate math inside the kernel stays f32.
    w_fused = pack_sgru_params(weight_hh, bias_ih, bias_hh, dtype=jnp.bfloat16)
    hx = hx_f32.astype(jnp.bfloat16)
    x = x_f32.astype(jnp.bfloat16)          # one-hot is exact in bf16
    w_fused, hx, x = jax.block_until_ready((w_fused, hx, x))

    state = (hx,)
    hy = sgru_cell_forward(x, state, w_fused, out_dtype=jnp.float32)
    hy = jax.block_until_ready(hy)

    # Reference: literal PyTorch transcription in f32, fed the same (bf16-rounded)
    # operands, so the check isolates kernel math from the intended quantization.
    q32 = lambda a: a.astype(jnp.bfloat16).astype(jnp.float32)
    hy_ref = sgru_cell_reference(
        x_f32, (hx.astype(jnp.float32),), q32(weight_hh), q32(bias_ih), q32(bias_hh))

    assert hy.shape == (1, B, H)
    max_err = float(jnp.max(jnp.abs(hy - hy_ref)))
    assert max_err < 1e-3, f"max abs error {max_err}"
    print("KERNEL_OK")
</pallas_src>

<mosaic_0001>
module attributes {stable_mosaic.version = 11 : i64} {
  func.func @_sgru_kernel(%arg0: memref<2x4xbf16, #tpu.memory_space<vmem>>, %arg1: memref<2x32xbf16, #tpu.memory_space<vmem>>, %arg2: memref<136x128xbf16, #tpu.memory_space<vmem>>, %arg3: memref<2x32xf32, #tpu.memory_space<vmem>>) attributes {dimension_semantics = [], scalar_prefetch = 0 : i64, scratch_operands = 0 : i64, tpu.core_type = #tpu.core_type<tc>} {
    %c0 = arith.constant 0 : index
    %c0_0 = arith.constant 0 : index
    %0 = vector.load %arg0[%c0, %c0_0] : memref<2x4xbf16, #tpu.memory_space<vmem>>, vector<2x4xbf16>
    %c0_1 = arith.constant 0 : index
    %c0_2 = arith.constant 0 : index
    %1 = vector.load %arg1[%c0_1, %c0_2] : memref<2x32xbf16, #tpu.memory_space<vmem>>, vector<2x32xbf16>
    %2 = vector.extract_strided_slice %0 {offsets = [0, 0], sizes = [2, 1], strides = [1, 1]} : vector<2x4xbf16> to vector<2x1xbf16>
    %3 = vector.broadcast %2 : vector<2x1xbf16> to vector<2x32xbf16>
    %4 = arith.mulf %1, %3 : vector<2x32xbf16>
    %5 = vector.extract_strided_slice %0 {offsets = [0, 1], sizes = [2, 1], strides = [1, 1]} : vector<2x4xbf16> to vector<2x1xbf16>
    %6 = vector.broadcast %5 : vector<2x1xbf16> to vector<2x32xbf16>
    %7 = arith.mulf %1, %6 : vector<2x32xbf16>
    %8 = vector.extract_strided_slice %0 {offsets = [0, 2], sizes = [2, 1], strides = [1, 1]} : vector<2x4xbf16> to vector<2x1xbf16>
    %9 = vector.broadcast %8 : vector<2x1xbf16> to vector<2x32xbf16>
    %10 = arith.mulf %1, %9 : vector<2x32xbf16>
    %11 = vector.extract_strided_slice %0 {offsets = [0, 3], sizes = [2, 1], strides = [1, 1]} : vector<2x4xbf16> to vector<2x1xbf16>
    %12 = vector.broadcast %11 : vector<2x1xbf16> to vector<2x32xbf16>
    %13 = arith.mulf %1, %12 : vector<2x32xbf16>
    %14 = tpu.concatenate %4, %7, %10, %13, %0, %0 in 1 : vector<2x32xbf16>, vector<2x32xbf16>, vector<2x32xbf16>, vector<2x32xbf16>, vector<2x4xbf16>, vector<2x4xbf16> -> vector<2x136xbf16>
    %c0_3 = arith.constant 0 : index
    %c0_4 = arith.constant 0 : index
    %15 = vector.load %arg2[%c0_3, %c0_4] : memref<136x128xbf16, #tpu.memory_space<vmem>>, vector<136x128xbf16>
    %cst = arith.constant dense<0.000000e+00> : vector<2x128xf32>
    %16 = tpu.matmul %14, %15, %cst {dimension_numbers = #tpu.dot_dimension_numbers<[1], [0], [0], [1], [0, 0, 1, 1], [], []>} : vector<2x136xbf16>, vector<136x128xbf16>, vector<2x128xf32> -> vector<2x128xf32>
    %17 = vector.extract_strided_slice %16 {offsets = [0, 0], sizes = [2, 32], strides = [1, 1]} : vector<2x128xf32> to vector<2x32xf32>
    %18 = arith.negf %17 : vector<2x32xf32>
    %19 = math.exp %18 : vector<2x32xf32>
    %cst_5 = arith.constant 1.000000e+00 : f32
    %20 = vector.broadcast %cst_5 : f32 to vector<2x32xf32>
    %21 = arith.addf %20, %19 : vector<2x32xf32>
    %22 = arith.divf %20, %21 : vector<2x32xf32>
    %23 = vector.extract_strided_slice %16 {offsets = [0, 32], sizes = [2, 32], strides = [1, 1]} : vector<2x128xf32> to vector<2x32xf32>
    %24 = arith.negf %23 : vector<2x32xf32>
    %25 = math.exp %24 : vector<2x32xf32>
    %cst_6 = arith.constant 1.000000e+00 : f32
    %26 = vector.broadcast %cst_6 : f32 to vector<2x32xf32>
    %27 = arith.addf %26, %25 : vector<2x32xf32>
    %28 = arith.divf %26, %27 : vector<2x32xf32>
    %29 = vector.extract_strided_slice %16 {offsets = [0, 96], sizes = [2, 32], strides = [1, 1]} : vector<2x128xf32> to vector<2x32xf32>
    %30 = vector.extract_strided_slice %16 {offsets = [0, 64], sizes = [2, 32], strides = [1, 1]} : vector<2x128xf32> to vector<2x32xf32>
    %31 = arith.mulf %22, %30 : vector<2x32xf32>
    %32 = arith.addf %29, %31 : vector<2x32xf32>
    %33 = math.tanh %32 : vector<2x32xf32>
    %34 = arith.extf %1 : vector<2x32xbf16> to vector<2x32xf32>
    %35 = arith.subf %34, %33 : vector<2x32xf32>
    %36 = arith.mulf %28, %35 : vector<2x32xf32>
    %37 = arith.addf %33, %36 : vector<2x32xf32>
    %c0_7 = arith.constant 0 : index
    %c0_8 = arith.constant 0 : index
    %38 = vector.load %arg3[%c0_7, %c0_8] : memref<2x32xf32, #tpu.memory_space<vmem>>, vector<2x32xf32>
    tpu.vector_store %arg3[%c0_7, %c0_8], %37 {strides = array<i32>} : memref<2x32xf32, #tpu.memory_space<vmem>>, vector<2x32xf32>,
    return
  }
}

</mosaic_0001>

<llo_original>
// kernel: tpu_custom_call.1
$region0: #{tpu_custom_call.1}
  #allocation0 [shape = 'u32[]', space=smem, size = 0x4, offset = 0x4, fixed_abs, tag = 'smem constant byte address 0x4 - core index']
  #allocation1 [shape = 'u32[72,128]{1,0:T(1,128)}', space=vmem, size = 0x9000, scoped, tag = 'internal scratch']
  %s0 = inlined_call_operand.hbm [shape: bf16[2,4], index: 0, kind: input, shape index: {}]
  %s1 = inlined_call_operand.hbm [shape: bf16[2,32], index: 1, kind: input, shape index: {}]
  %s2 = inlined_call_operand.hbm [shape: bf16[136,128], index: 2, kind: input, shape index: {}]
  %s3 = inlined_call_operand.hbm [shape: f32[2,32], index: 3, kind: output, shape index: {}]
  %s4 = sld [smem:[#allocation0]]
  $region34: #{tpu_custom_call.1} parent=0
    _
  %s6 = ssub.s32 1, %s4
  %s7 = scalar_select 0, %s6, %s4
  $region1: #{tpu_custom_call.1} parent=0
    #allocation2 [shape = 'u8[512]{0}', space=vmem, size = 0x400, scoped, tag = 'input window, operand 0, single buffered']
    #allocation3 [shape = 's32[1]{0}', space=sflag, size = 0x4, scoped, tag = 'scoped memory for tpu_custom_call.1']
    #allocation4 [shape = 's32[1]{0}', space=sflag, size = 0x4, scoped, tag = 'scoped memory for tpu_custom_call.1']
    #allocation5 [shape = 'u8[512]{0}', space=vmem, size = 0x400, scoped, tag = 'input window, operand 1, single buffered']
    #allocation6 [shape = 's32[1]{0}', space=sflag, size = 0x4, scoped, tag = 'scoped memory for tpu_custom_call.1']
    #allocation7 [shape = 'u8[34816]{0}', space=vmem, size = 0x8800, scoped, tag = 'input window, operand 2, single buffered']
    #allocation8 [shape = 'u8[1024]{0}', space=vmem, size = 0x400, scoped, tag = 'output window, operand 0, single buffered']
    %8 = vsyncpa [#allocation3], 0
    %9 = vsyncpa [#allocation6], 0
    %10 = vsyncpa [#allocation4], 0
    // Predicated region
    $region2: #{tpu_custom_call.1} parent=1 // pred_check
      _
    $region3: #{tpu_custom_call.1} parent=1 // pred_check_branch
      %12 = sbr.rel (0) target = $region5
    $region4: #{tpu_custom_call.1} parent=1 // pred_region
      %14 = vsyncadd [#allocation3], 0
      %s16 = sshll.u32 %s0, 4
      %s17 = int_to_ptr.hbm [resolvable:$true] %s16
      %s18 = sshll.u32 [#allocation2], 4
      %s19 = int_to_ptr.vmem [resolvable:$true] %s18
      %21 = dma.hbm_to_vmem [thread:$0]  %s17, 16, %s19, [#allocation3]
    $region5: #{tpu_custom_call.1} parent=1 // pred_fallthru
      _
    // Predicated region
    $region6: #{tpu_custom_call.1} parent=1 // pred_check
      _
    $region7: #{tpu_custom_call.1} parent=1 // pred_check_branch
      %23 = sbr.rel (0) target = $region9
    $region8: #{tpu_custom_call.1} parent=1 // pred_region
      %25 = vsyncadd [#allocation6], 0
      %s27 = sshll.u32 %s1, 4
      %s28 = int_to_ptr.hbm [resolvable:$true] %s27
      %s29 = sshll.u32 [#allocation5], 4
      %s30 = int_to_ptr.vmem [resolvable:$true] %s29
      %32 = dma.hbm_to_vmem [thread:$0]  %s28, 16, %s30, [#allocation6]
    $region9: #{tpu_custom_call.1} parent=1 // pred_fallthru
      _
    // Predicated region
    $region10: #{tpu_custom_call.1} parent=1 // pred_check
      _
    $region11: #{tpu_custom_call.1} parent=1 // pred_check_branch
      %34 = sbr.rel (0) target = $region13
    $region12: #{tpu_custom_call.1} parent=1 // pred_region
      %36 = vsyncadd [#allocation6], 0
      %s37 = sshll.u32 %s2, 4
      %s38 = int_to_ptr.hbm [resolvable:$true] %s37
      %s39 = sshll.u32 [#allocation7], 4
      %s40 = int_to_ptr.vmem [resolvable:$true] %s39
      %45 = dma.hbm_to_vmem [thread:$0]  %s38, 1088, %s40, [#allocation6], 64, 64, 4
    $region13: #{tpu_custom_call.1} parent=1 // pred_fallthru
      _
    // Predicated region
    $region14: #{tpu_custom_call.1} parent=1 // pred_check
      _
    $region15: #{tpu_custom_call.1} parent=1 // pred_check_branch
      %47 = sbr.rel (0) target = $region17
    $region16: #{tpu_custom_call.1} parent=1 // pred_region
      %49 = dma.done [#allocation3], 16
    $region17: #{tpu_custom_call.1} parent=1 // pred_fallthru
      _
    // Predicated region
    $region18: #{tpu_custom_call.1} parent=1 // pred_check
      _
    $region19: #{tpu_custom_call.1} parent=1 // pred_check_branch
      %51 = sbr.rel (0) target = $region21
    $region20: #{tpu_custom_call.1} parent=1 // pred_region
      %53 = dma.done [#allocation6], 16
    $region21: #{tpu_custom_call.1} parent=1 // pred_fallthru
      _
    // Predicated region
    $region22: #{tpu_custom_call.1} parent=1 // pred_check
      _
    $region23: #{tpu_custom_call.1} parent=1 // pred_check_branch
      %55 = sbr.rel (0) target = $region25
    $region24: #{tpu_custom_call.1} parent=1 // pred_region
      %57 = dma.done [#allocation6], 1088
    $region25: #{tpu_custom_call.1} parent=1 // pred_fallthru
      _
    %v59 = vld [vmem:[#allocation2] sm:$0x1]
    %v60 = vld [vmem:[#allocation5] sm:$0x1]
    %62 = vset.pattern.permute.xlu0 0
    %63 = vperm.xlu0 %62, %v59
    %v64 = vpop.permute.xlu0 %63
    %v66 = vperm.slane %v64, 0
    %v67 = vunpack.c.l.bf16 %v60
    %v68 = vunpack.c.l.bf16 %v66
    %v69 = vmul.f32 %v67, %v68
    %v70 = vpack.c.bf16 %v69, %v69
    %71 = vset.pattern.permute.xlu0 1
    %72 = vperm.xlu0 %71, %v59
    %v73 = vpop.permute.xlu0 %72
    %v75 = vperm.slane %v73, 0
    %v76 = vunpack.c.l.bf16 %v75
    %v77 = vmul.f32 %v67, %v76
    %v78 = vpack.c.bf16 %v77, %v77
    %79 = vset.pattern.permute.xlu0 2
    %80 = vperm.xlu0 %79, %v59
    %v81 = vpop.permute.xlu0 %80
    %v83 = vperm.slane %v81, 0
    %v84 = vunpack.c.l.bf16 %v83
    %v85 = vmul.f32 %v67, %v84
    %v86 = vpack.c.bf16 %v85, %v85
    %87 = vset.pattern.permute.xlu0 3
    %88 = vperm.xlu0 %87, %v59
    %v89 = vpop.permute.xlu0 %88
    %v91 = vperm.slane %v89, 0
    %v92 = vunpack.c.l.bf16 %v91
    %v93 = vmul.f32 %v67, %v92
    %v94 = vpack.c.bf16 %v93, %v93
    %v96 = vunpack.c.l.b16 %v78
    %v97 = vpack.c.b16 %v96, %v96
    %98 = vrot.lane.b32.xlu0 %v97, 32
    %v99 = vpop.permute.xlu0 %98
    %v101 = vunpack.c.l.b16 %v86
    %v102 = vpack.c.b16 %v101, %v101
    %103 = vrot.lane.b32.xlu0 %v102, 64
    %v104 = vpop.permute.xlu0 %103
    %v106 = vunpack.c.l.b16 %v94
    %v107 = vpack.c.b16 %v106, %v106
    %108 = vrot.lane.b32.xlu0 %v107, 96
    %v109 = vpop.permute.xlu0 %108
    %110 = vst [vmem:[#allocation1] ss:$9 sm:$0xff] %v59
    %v111 = vld [vmem:[#allocation1] sm:$0xff]
    %113 = vrot.lane.b32.xlu0 %v111, 4
    %v114 = vpop.permute.xlu0 %113
    %vm115 = vcmask 261120
    %v118 = vsel %vm115, %v70, %v99
    %vm119 = vcmask 523264
    %v121 = vsel %vm119, %v118, %v104
    %vm122 = vcmask 785408
    %v124 = vsel %vm122, %v121, %v109
    %vm126 = vcmask 31744
    %v128 = vsel %vm126, %v59, %v114
    %v129 = vld [vmem:[#allocation7] sm:$0xf]
    %v130 = vld [vmem:[#allocation7 + $0x4] sm:$0xf]
    %v131 = vld [vmem:[#allocation7 + $0x8] sm:$0xf]
    %v132 = vld [vmem:[#allocation7 + $0xc] sm:$0xf]
    %v133 = vld [vmem:[#allocation7 + $0x10] sm:$0xf]
    %v134 = vld [vmem:[#allocation7 + $0x14] sm:$0xf]
    %v135 = vld [vmem:[#allocation7 + $0x18] sm:$0xf]
    %v136 = vld [vmem:[#allocation7 + $0x1c] sm:$0xf]
    %v137 = vld [vmem:[#allocation7 + $0x20] sm:$0xf]
    %v138 = vld [vmem:[#allocation7 + $0x24] sm:$0xf]
    %v139 = vld [vmem:[#allocation7 + $0x28] sm:$0xf]
    %v140 = vld [vmem:[#allocation7 + $0x2c] sm:$0xf]
    %v141 = vld [vmem:[#allocation7 + $0x30] sm:$0xf]
    %v142 = vld [vmem:[#allocation7 + $0x34] sm:$0xf]
    %v143 = vld [vmem:[#allocation7 + $0x38] sm:$0xf]
    %v144 = vld [vmem:[#allocation7 + $0x3c] sm:$0xf]
    %v145 = vld [vmem:[#allocation7 + $0x40] sm:$0xf]
    %v163 = vunpack.c.l.b16 %v129
    %v164 = vunpack.c.l.b16 %v130
    %v165 = vunpack.c.l.b16 %v131
    %v166 = vunpack.c.l.b16 %v132
    %v167 = vunpack.c.l.b16 %v133
    %v168 = vunpack.c.l.b16 %v134
    %v169 = vunpack.c.l.b16 %v135
    %v170 = vunpack.c.l.b16 %v136
    %v171 = vunpack.c.l.b16 %v137
    %v172 = vunpack.c.l.b16 %v138
    %v173 = vunpack.c.l.b16 %v139
    %v174 = vunpack.c.l.b16 %v140
    %v175 = vunpack.c.l.b16 %v141
    %v176 = vunpack.c.l.b16 %v142
    %v177 = vunpack.c.l.b16 %v143
    %v178 = vunpack.c.l.b16 %v144
    %v179 = vunpack.c.l.b16 %v145
    %v180 = vpack.c.b16 %v164, %v163
    %v181 = vpack.c.b16 %v166, %v165
    %v182 = vpack.c.b16 %v168, %v167
    %v183 = vpack.c.b16 %v170, %v169
    %v184 = vpack.c.b16 %v172, %v171
    %v185 = vpack.c.b16 %v174, %v173
    %v186 = vpack.c.b16 %v176, %v175
    %v187 = vpack.c.b16 %v178, %v177
    %v188 = vpack.c.b16 %v179, %v179
    %vm197 = vcmask 64512
    %v198 = vsel %vm197, %v128, 0
    %vm200 = vcmask 1043456
    %v202 = vsel %vm200, %v188, 0
    %204 = vmatpush.bf16.msra.mxu0 %v187
    %205 = vmatpush.bf16.msra.mxu0 %v186
    %206 = vmatpush.bf16.msra.mxu0 %v185
    %207 = vmatpush.bf16.msra.mxu0 %v184
    %208 = vmatpush.bf16.msra.mxu0 %v183
    %209 = vmatpush.bf16.msra.mxu0 %v182
    %210 = vmatpush.bf16.msra.mxu0 %v181
    %211 = vmatpush.bf16.msra.mxu0 %v180
    %212 = vmatmul.bf16.gmra.mxu0 %v124
    %v213 = vpop.f32.mrf.mxu0
    %v214 = vadd.f32 0.0, %v213
    %v215 = vpop.f32.mrf.mxu0
    %216 = vdwg.mxu0
    %217 = vmatpush.bf16.msra.mxu0 0
    %218 = vmatpush.bf16.msra.mxu0 0
    %219 = vmatpush.bf16.msra.mxu0 0
    %220 = vmatpush.bf16.msra.mxu0 0
    %221 = vmatpush.bf16.msra.mxu0 0
    %222 = vmatpush.bf16.msra.mxu0 0
    %223 = vmatpush.bf16.msra.mxu0 0
    %224 = vmatpush.bf16.msra.mxu0 %v202
    %225 = vmatmul.bf16.gmra.mxu0 %v198
    %v226 = vpop.f32.mrf.mxu0
    %v227 = vadd.f32 %v214, %v226
    %v228 = vpop.f32.mrf.mxu0
    %229 = vdwg.mxu0
    %v230 = vxor.u32 %v227, 2147483648
    %v231 = vmul.f32 %v230, 1.442695
    %v232 = vpow.pop %v231
    %v233 = vadd.f32 %v232, 1.0
    %v234 = vrcp.pop %v233
    %v235 = vmul.f32 %v233, %v234
    %v236 = vsub.f32 1.0, %v235
    %v237 = vmul.f32 %v234, %v236
    %v238 = vadd.f32 %v234, %v237
    %vm239 = vweird.f32 %v233
    %vm240 = vweird.f32 %v234
    %vm241 = vmor %vm239, %vm240
    %v242 = vsel %vm241, %v234, %v238
    %v243 = vand.u32 2147483647, %v233
    %vm244 = vcmp.eq.f32.partialorder %v243, 8.507059e+37
    %v245 = vand.u32 %v233, 2147483648
    %v246 = vor.u32 1.1754944e-38, %v245
    %v247 = vsel %vm244, %v246, %v242
    %v248 = vmul.f32 1.0, %v247
    %250 = vrot.lane.b32.xlu0 %v227, 64
    %v251 = vpop.permute.xlu0 %250
    %v253 = vmul.f32 %v248, %v251
    %255 = vrot.lane.b32.xlu0 %v253, 96
    %v256 = vpop.permute.xlu0 %255
    %v258 = vadd.f32 %v227, %v256
    %v259 = vtanh.pop %v258
    %261 = vrot.lane.b32.xlu0 %v259, 32
    %v262 = vpop.permute.xlu0 %261
    %v264 = vsub.f32 %v67, %v262
    %266 = vst [vmem:[#allocation1] ss:$4 sm:$0xff] %v264
    %v267 = vld.sshfl [vmem:[#allocation1] sm:$0xff pattern:$0x73625140]
    %268 = vrot.lane.b32.xlu0 %v267, 32
    %v269 = vpop.permute.xlu0 %268
    %v271 = vmul.f32 %v248, %v269
    %273 = vrot.lane.b32.xlu0 %v271, 64
    %v274 = vpop.permute.xlu0 %273
    %v276 = vadd.f32 %v259, %v274
    %278 = vrot.lane.b32.xlu0 %v276, 32
    %v279 = vpop.permute.xlu0 %278
    %vm281 = vcmask 254976
    %282 = vst.msk [vmem:[#allocation8] sm:$0x3] %vm281, %v279
    // Predicated region
    $region26: #{tpu_custom_call.1} parent=1 // pred_check
      _
    $region27: #{tpu_custom_call.1} parent=1 // pred_check_branch
      %284 = sbr.rel (0) target = $region29
    $region28: #{tpu_custom_call.1} parent=1 // pred_region
      %286 = vsyncadd [#allocation4], 0
      %s288 = sshll.u32 [#allocation8], 4
      %s289 = int_to_ptr.vmem [resolvable:$true] %s288
      %s290 = sshll.u32 %s3, 4
      %s291 = int_to_ptr.hbm [resolvable:$true] %s290
      %293 = dma.vmem_to_hbm [thread:$0]  %s289, 32, %s291, [#allocation4]
    $region29: #{tpu_custom_call.1} parent=1 // pred_fallthru
      _
    // Predicated region
    $region30: #{tpu_custom_call.1} parent=1 // pred_check
      _
    $region31: #{tpu_custom_call.1} parent=1 // pred_check_branch
      %295 = sbr.rel (0) target = $region33
    $region32: #{tpu_custom_call.1} parent=1 // pred_region
      %297 = dma.done [#allocation4], 32
    $region33: #{tpu_custom_call.1} parent=1 // pred_fallthru
      _
    %298 = vsyncpa [#allocation3], 1
    %299 = vsyncpa [#allocation6], 1
    %300 = vsyncpa [#allocation4], 1

</llo_original>
